<compile_context>
chip_gen: v6e
topology: v6e:2x2x1
jax: 0.10.0
libtpu: 0.0.40
codegen_flags: <defaults>
</compile_context>

<pallas_src>
import jax
import jax.numpy as jnp
from jax.experimental import pallas as pl
from jax.experimental.pallas import tpu as pltpu

_LANES = 128
_SUBLANES = 8


def _round_up(n, m):
    return ((n + m - 1) // m) * m


# ----------------------------- mask construction (glue, plain JAX) -----------------------------
def get_mask(in_features, out_features, in_flow_features, mask_type=None):
    # NOTE: num_inputs == 1 would divide by zero (same as the original torch code).
    if mask_type == 'input':
        in_degrees = jnp.arange(in_features) % in_flow_features
    else:
        in_degrees = jnp.arange(in_features) % (in_flow_features - 1)
    if mask_type == 'output':
        out_degrees = jnp.arange(out_features) % in_flow_features - 1
    else:
        out_degrees = jnp.arange(out_features) % (in_flow_features - 1)
    # torch returns float64; values are exactly 0/1 so float32 is numerically identical.
    return (out_degrees[:, None] >= in_degrees[None, :]).astype(jnp.float32)


# ----------------------------- Pallas kernel: the whole MADE hot path -----------------------------
def made_kernel(x_ref, w1_ref, b1_ref, w2_ref, b2_ref, w3_ref, b3_ref,
                u_ref, logdet_ref):
    cdt = w1_ref.dtype                               # compute dtype (bf16 or f32)
    D = u_ref.shape[-1]                              # true feature dim (unpadded)
    Dp = w3_ref.shape[-1] // 2                       # lane-padded head width

    # joiner: masked linear (mask already folded into w1)
    h = jnp.dot(x_ref[...].astype(cdt), w1_ref[...],
                preferred_element_type=jnp.float32) + b1_ref[...]
    # trunk: ReLU -> masked linear -> ReLU -> fused (m|a) masked linear
    h = jnp.maximum(h, 0.0)
    h = jnp.dot(h.astype(cdt), w2_ref[...],
                preferred_element_type=jnp.float32) + b2_ref[...]
    h = jnp.maximum(h, 0.0)
    out = jnp.dot(h.astype(cdt), w3_ref[...],
                  preferred_element_type=jnp.float32) + b3_ref[...]

    m = out[:, :D]                                   # lane-offset 0, narrow
    a_full = out[:, Dp:]                             # lane-aligned slice (Dp % 128 == 0)
    a = a_full[:, :D]

    # re-read x here (short live range) instead of holding it across the matmuls
    u_ref[...] = (x_ref[...] - m) * jnp.exp(-a)
    # padded lanes of a_full are exactly 0 (zero weights + zero bias) -> exact sum
    logdet_ref[...] = -jnp.sum(a_full, axis=-1, keepdims=True)


def made_forward(x, prepped_params, *, block_batch=512):
    """prepped_params = prepare_made_params(...): (w1, b1, w2, b2, w3, b3), padded/fused."""
    w1, b1, w2, b2, w3, b3 = prepped_params
    B, D = x.shape
    assert w1.shape[0] == D
    Hp = w1.shape[1]
    Dp2 = w3.shape[1]

    B8 = _round_up(B, _SUBLANES)
    # fat batch tiles, but keep >= 2 grid steps when possible (v7x has 2 TensorCores)
    tb_half = _round_up(-(-B8 // 2), _SUBLANES)
    TB = max(_SUBLANES, min(_round_up(block_batch, _SUBLANES), tb_half))
    Bp = _round_up(B8, TB)

    xp = x.astype(jnp.float32)
    if Bp != B:
        xp = jnp.pad(xp, ((0, Bp - B), (0, 0)))      # batch rows only (no lane padding)

    grid = (Bp // TB,)

    def resident(shape):
        # weights/biases: same block every grid step -> DMA'd once, VMEM-resident
        return pl.BlockSpec(shape, lambda i: (0, 0))

    in_specs = [
        pl.BlockSpec((TB, D), lambda i: (i, 0)),     # x, streamed over batch, true D lanes
        resident(w1.shape), resident(b1.shape),      # w1 (D, Hp), b1 (1, Hp)
        resident(w2.shape), resident(b2.shape),      # w2 (Hp, Hp), b2 (1, Hp)
        resident(w3.shape), resident(b3.shape),      # fused head (Hp, 2*Dp), (1, 2*Dp)
    ]
    out_specs = (
        pl.BlockSpec((TB, D), lambda i: (i, 0)),     # u
        pl.BlockSpec((TB, 1), lambda i: (i, 0)),     # -sum(a)
    )
    out_shape = (
        jax.ShapeDtypeStruct((Bp, D), jnp.float32),
        jax.ShapeDtypeStruct((Bp, 1), jnp.float32),
    )

    w_isize = jnp.dtype(w1.dtype).itemsize
    flops = 2 * Bp * (D * Hp + Hp * Hp + Hp * Dp2)
    bytes_accessed = (
        xp.size * 4
        + (w1.size + w2.size + w3.size) * w_isize
        + (b1.size + b2.size + b3.size) * 4
        + Bp * D * 4 + Bp * 4
    )
    cost = pl.CostEstimate(flops=flops, transcendentals=Bp * D,
                           bytes_accessed=bytes_accessed)

    u_pad, logdet_pad = pl.pallas_call(
        made_kernel,
        out_shape=out_shape,
        grid=grid,
        in_specs=in_specs,
        out_specs=out_specs,
        compiler_params=pltpu.CompilerParams(dimension_semantics=("parallel",)),
        cost_estimate=cost,
    )(xp, w1, b1, w2, b2, w3, b3)

    if Bp != B:
        return u_pad[:B], logdet_pad[:B]
    return u_pad, logdet_pad


# ----------------------------- deterministic parameter setup -----------------------------
def init_linear(key, in_f, out_f):
    """Mimic torch nn.Linear default init: U(-1/sqrt(in), 1/sqrt(in))."""
    kw, kb = jax.random.split(key)
    bound = 1.0 / jnp.sqrt(jnp.float32(in_f))
    W = jax.random.uniform(kw, (out_f, in_f), jnp.float32, -bound, bound)
    b = jax.random.uniform(kb, (1, out_f), jnp.float32, -bound, bound)
    return W, b


def build_made_params(key, num_inputs, num_hidden):
    """Raw (mask-folded, [in, out]-transposed) parameters, unpadded f32."""
    input_mask = get_mask(num_inputs, num_hidden, num_inputs, mask_type='input')
    hidden_mask = get_mask(num_hidden, num_hidden, num_inputs)
    output_mask = get_mask(num_hidden, num_inputs * 2, num_inputs, mask_type='output')

    k1, k2, k3 = jax.random.split(key, 3)
    W1, b1 = init_linear(k1, num_inputs, num_hidden)
    W2, b2 = init_linear(k2, num_hidden, num_hidden)
    W3, b3 = init_linear(k3, num_hidden, num_inputs * 2)

    D = num_inputs
    w1t = (W1 * input_mask).T                        # (D, H)
    w2t = (W2 * hidden_mask).T                       # (H, H)
    W3m = (W3 * output_mask)[:D]                     # (D, H)
    W3a = (W3 * output_mask)[D:]                     # (D, H)
    return w1t, b1, w2t, b2, W3m.T, b3[:, :D], W3a.T, b3[:, D:]


def prepare_made_params(raw_params, compute_dtype=jnp.bfloat16):
    """One-time prep (hoisted out of the forward): pad hidden/head dims to 128 lanes,
    fuse the m/a output heads into one weight/bias, cast matmul operands to compute_dtype.
    Biases stay f32 (added after the f32-accumulated dots)."""
    w1t, b1, w2t, b2, w3mt, b3m, w3at, b3a = raw_params
    D, H = w1t.shape
    Hp = _round_up(H, _LANES)
    Dp = _round_up(D, _LANES)

    w1 = jnp.zeros((D, Hp), jnp.float32).at[:, :H].set(w1t)
    w2 = jnp.zeros((Hp, Hp), jnp.float32).at[:H, :H].set(w2t)
    # fused output head: m in lanes [0, D), a in lanes [Dp, Dp + D) — lane-aligned halves
    w3 = (jnp.zeros((Hp, 2 * Dp), jnp.float32)
          .at[:H, :D].set(w3mt)
          .at[:H, Dp:Dp + D].set(w3at))
    b1p = jnp.zeros((1, Hp), jnp.float32).at[:, :H].set(b1)
    b2p = jnp.zeros((1, Hp), jnp.float32).at[:, :H].set(b2)
    b3p = (jnp.zeros((1, 2 * Dp), jnp.float32)
           .at[:, :D].set(b3m)
           .at[:, Dp:Dp + D].set(b3a))
    return (w1.astype(compute_dtype), b1p,
            w2.astype(compute_dtype), b2p,
            w3.astype(compute_dtype), b3p)


# ----------------------------- pure-JAX reference -----------------------------
def made_ref(x, raw_params):
    w1t, b1, w2t, b2, w3mt, b3m, w3at, b3a = raw_params
    h = jnp.maximum(x @ w1t + b1, 0.0)
    h = jnp.maximum(h @ w2t + b2, 0.0)
    m = h @ w3mt + b3m
    a = h @ w3at + b3a
    u = (x - m) * jnp.exp(-a)
    return u, -jnp.sum(a, axis=-1, keepdims=True)


if __name__ == "__main__":
    # TODO(synk): cond_inputs path and 'inverse' (sequential sampling) mode are not
    # implemented; this covers the default direct-mode forward with num_cond_inputs=None.
    num_inputs, num_hidden, batch = 16, 32, 64

    key = jax.random.PRNGKey(0)
    kx, kp = jax.random.split(key)
    x = jax.random.normal(kx, (batch, num_inputs), jnp.float32)
    raw_params = build_made_params(kp, num_inputs, num_hidden)
    u_ref, nl_ref = made_ref(x, raw_params)

    # default perf path: bf16 matmul operands, f32 accumulate; TB sized for grid=(2,)
    params_bf16 = prepare_made_params(raw_params, compute_dtype=jnp.bfloat16)
    u16, nl16 = made_forward(x, params_bf16)
    jax.block_until_ready((u16, nl16))
    assert u16.shape == (batch, num_inputs)
    assert nl16.shape == (batch, 1)
    assert jnp.allclose(u16, u_ref, atol=2e-1, rtol=5e-2)
    assert jnp.allclose(nl16, nl_ref, atol=2e-1, rtol=5e-2)

    # strict-numerics f32 path; block_batch=16 -> grid=(4,) exercises the batch pipeline
    params_f32 = prepare_made_params(raw_params, compute_dtype=jnp.float32)
    u32, nl32 = made_forward(x, params_f32, block_batch=16)
    jax.block_until_ready((u32, nl32))
    assert jnp.allclose(u32, u_ref, atol=1e-5, rtol=1e-5)
    assert jnp.allclose(nl32, nl_ref, atol=1e-5, rtol=1e-5)

    print("KERNEL_OK")
</pallas_src>

<mosaic_0001>
module attributes {stable_mosaic.version = 11 : i64} {
  func.func @made_kernel(%arg0: i32, %arg1: memref<32x16xf32, #tpu.memory_space<vmem>>, %arg2: memref<16x128xbf16, #tpu.memory_space<vmem>>, %arg3: memref<1x128xf32, #tpu.memory_space<vmem>>, %arg4: memref<128x128xbf16, #tpu.memory_space<vmem>>, %arg5: memref<1x128xf32, #tpu.memory_space<vmem>>, %arg6: memref<128x256xbf16, #tpu.memory_space<vmem>>, %arg7: memref<1x256xf32, #tpu.memory_space<vmem>>, %arg8: memref<32x16xf32, #tpu.memory_space<vmem>>, %arg9: memref<32x1xf32, #tpu.memory_space<vmem>>) attributes {dimension_semantics = [#tpu.dimension_semantics<parallel>], iteration_bounds = array<i64: 2>, scalar_prefetch = 0 : i64, scratch_operands = 0 : i64, tpu.core_type = #tpu.core_type<tc>, window_params = [{transform_indices = @transform_0, window_bounds = array<i64: 32, 16>}, {pipeline_mode = #tpu.pipeline_mode<synchronous>, transform_indices = @transform_1, window_bounds = array<i64: 16, 128>}, {pipeline_mode = #tpu.pipeline_mode<synchronous>, transform_indices = @transform_2, window_bounds = array<i64: 1, 128>}, {pipeline_mode = #tpu.pipeline_mode<synchronous>, transform_indices = @transform_3, window_bounds = array<i64: 128, 128>}, {pipeline_mode = #tpu.pipeline_mode<synchronous>, transform_indices = @transform_4, window_bounds = array<i64: 1, 128>}, {pipeline_mode = #tpu.pipeline_mode<synchronous>, transform_indices = @transform_5, window_bounds = array<i64: 128, 256>}, {pipeline_mode = #tpu.pipeline_mode<synchronous>, transform_indices = @transform_6, window_bounds = array<i64: 1, 256>}, {transform_indices = @transform_7, window_bounds = array<i64: 32, 16>}, {transform_indices = @transform_8, window_bounds = array<i64: 32, 1>}]} {
    %c0 = arith.constant 0 : index
    %c0_0 = arith.constant 0 : index
    %0 = vector.load %arg1[%c0, %c0_0] : memref<32x16xf32, #tpu.memory_space<vmem>>, vector<32x16xf32>
    %1 = arith.truncf %0 : vector<32x16xf32> to vector<32x16xbf16>
    %c0_1 = arith.constant 0 : index
    %c0_2 = arith.constant 0 : index
    %2 = vector.load %arg2[%c0_1, %c0_2] : memref<16x128xbf16, #tpu.memory_space<vmem>>, vector<16x128xbf16>
    %cst = arith.constant dense<0.000000e+00> : vector<32x128xf32>
    %3 = tpu.matmul %1, %2, %cst {dimension_numbers = #tpu.dot_dimension_numbers<[1], [0], [0], [1], [0, 0, 1, 1], [], []>} : vector<32x16xbf16>, vector<16x128xbf16>, vector<32x128xf32> -> vector<32x128xf32>
    %c0_3 = arith.constant 0 : index
    %c0_4 = arith.constant 0 : index
    %4 = vector.load %arg3[%c0_3, %c0_4] : memref<1x128xf32, #tpu.memory_space<vmem>>, vector<1x128xf32>
    %5 = vector.broadcast %4 : vector<1x128xf32> to vector<32x128xf32>
    %6 = arith.addf %3, %5 : vector<32x128xf32>
    %cst_5 = arith.constant 0.000000e+00 : f32
    %7 = vector.broadcast %cst_5 : f32 to vector<32x128xf32>
    %8 = arith.maximumf %6, %7 : vector<32x128xf32>
    %9 = arith.truncf %8 : vector<32x128xf32> to vector<32x128xbf16>
    %c0_6 = arith.constant 0 : index
    %c0_7 = arith.constant 0 : index
    %10 = vector.load %arg4[%c0_6, %c0_7] : memref<128x128xbf16, #tpu.memory_space<vmem>>, vector<128x128xbf16>
    %cst_8 = arith.constant dense<0.000000e+00> : vector<32x128xf32>
    %11 = tpu.matmul %9, %10, %cst_8 {dimension_numbers = #tpu.dot_dimension_numbers<[1], [0], [0], [1], [0, 0, 1, 1], [], []>} : vector<32x128xbf16>, vector<128x128xbf16>, vector<32x128xf32> -> vector<32x128xf32>
    %c0_9 = arith.constant 0 : index
    %c0_10 = arith.constant 0 : index
    %12 = vector.load %arg5[%c0_9, %c0_10] : memref<1x128xf32, #tpu.memory_space<vmem>>, vector<1x128xf32>
    %13 = vector.broadcast %12 : vector<1x128xf32> to vector<32x128xf32>
    %14 = arith.addf %11, %13 : vector<32x128xf32>
    %cst_11 = arith.constant 0.000000e+00 : f32
    %15 = vector.broadcast %cst_11 : f32 to vector<32x128xf32>
    %16 = arith.maximumf %14, %15 : vector<32x128xf32>
    %17 = arith.truncf %16 : vector<32x128xf32> to vector<32x128xbf16>
    %c0_12 = arith.constant 0 : index
    %c0_13 = arith.constant 0 : index
    %18 = vector.load %arg6[%c0_12, %c0_13] : memref<128x256xbf16, #tpu.memory_space<vmem>>, vector<128x256xbf16>
    %cst_14 = arith.constant dense<0.000000e+00> : vector<32x256xf32>
    %19 = tpu.matmul %17, %18, %cst_14 {dimension_numbers = #tpu.dot_dimension_numbers<[1], [0], [0], [1], [0, 0, 1, 1], [], []>} : vector<32x128xbf16>, vector<128x256xbf16>, vector<32x256xf32> -> vector<32x256xf32>
    %c0_15 = arith.constant 0 : index
    %c0_16 = arith.constant 0 : index
    %20 = vector.load %arg7[%c0_15, %c0_16] : memref<1x256xf32, #tpu.memory_space<vmem>>, vector<1x256xf32>
    %21 = vector.broadcast %20 : vector<1x256xf32> to vector<32x256xf32>
    %22 = arith.addf %19, %21 : vector<32x256xf32>
    %23 = vector.extract_strided_slice %22 {offsets = [0, 0], sizes = [32, 16], strides = [1, 1]} : vector<32x256xf32> to vector<32x16xf32>
    %24 = vector.extract_strided_slice %22 {offsets = [0, 128], sizes = [32, 128], strides = [1, 1]} : vector<32x256xf32> to vector<32x128xf32>
    %25 = vector.extract_strided_slice %24 {offsets = [0, 0], sizes = [32, 16], strides = [1, 1]} : vector<32x128xf32> to vector<32x16xf32>
    %c0_17 = arith.constant 0 : index
    %c0_18 = arith.constant 0 : index
    %26 = vector.load %arg1[%c0_17, %c0_18] : memref<32x16xf32, #tpu.memory_space<vmem>>, vector<32x16xf32>
    %27 = arith.subf %26, %23 : vector<32x16xf32>
    %cst_19 = arith.constant 0.000000e+00 : f32
    %28 = vector.broadcast %cst_19 : f32 to vector<32x16xf32>
    %29 = arith.subf %28, %25 : vector<32x16xf32>
    %30 = math.exp %29 : vector<32x16xf32>
    %31 = arith.mulf %27, %30 : vector<32x16xf32>
    %c0_20 = arith.constant 0 : index
    %c0_21 = arith.constant 0 : index
    %32 = vector.load %arg8[%c0_20, %c0_21] : memref<32x16xf32, #tpu.memory_space<vmem>>, vector<32x16xf32>
    tpu.vector_store %arg8[%c0_20, %c0_21], %31 {strides = array<i32>} : memref<32x16xf32, #tpu.memory_space<vmem>>, vector<32x16xf32>,
    %cst_22 = arith.constant dense<0.000000e+00> : vector<32xf32>
    %33 = vector.multi_reduction <add>, %24, %cst_22 [1] : vector<32x128xf32> to vector<32xf32>
    %34 = vector.shape_cast %33 : vector<32xf32> to vector<32x1xf32>
    %cst_23 = arith.constant 0.000000e+00 : f32
    %35 = vector.broadcast %cst_23 : f32 to vector<32x1xf32>
    %36 = arith.subf %35, %34 : vector<32x1xf32>
    %c0_24 = arith.constant 0 : index
    %c0_25 = arith.constant 0 : index
    %37 = vector.load %arg9[%c0_24, %c0_25] : memref<32x1xf32, #tpu.memory_space<vmem>>, vector<32x1xf32>
    tpu.vector_store %arg9[%c0_24, %c0_25], %36 {strides = array<i32>} : memref<32x1xf32, #tpu.memory_space<vmem>>, vector<32x1xf32>,
    return
  }
  func.func @transform_0(%arg0: i32) -> (i32, i32) {
    %c0_i32 = arith.constant 0 : i32
    %c0_i32_0 = arith.constant 0 : i32
    return %arg0, %c0_i32 : i32, i32
  }
  func.func @transform_1(%arg0: i32) -> (i32, i32) {
    %c0_i32 = arith.constant 0 : i32
    %c0_i32_0 = arith.constant 0 : i32
    %c0_i32_1 = arith.constant 0 : i32
    return %c0_i32, %c0_i32_0 : i32, i32
  }
  func.func @transform_2(%arg0: i32) -> (i32, i32) {
    %c0_i32 = arith.constant 0 : i32
    %c0_i32_0 = arith.constant 0 : i32
    %c0_i32_1 = arith.constant 0 : i32
    return %c0_i32, %c0_i32_0 : i32, i32
  }
  func.func @transform_3(%arg0: i32) -> (i32, i32) {
    %c0_i32 = arith.constant 0 : i32
    %c0_i32_0 = arith.constant 0 : i32
    %c0_i32_1 = arith.constant 0 : i32
    return %c0_i32, %c0_i32_0 : i32, i32
  }
  func.func @transform_4(%arg0: i32) -> (i32, i32) {
    %c0_i32 = arith.constant 0 : i32
    %c0_i32_0 = arith.constant 0 : i32
    %c0_i32_1 = arith.constant 0 : i32
    return %c0_i32, %c0_i32_0 : i32, i32
  }
  func.func @transform_5(%arg0: i32) -> (i32, i32) {
    %c0_i32 = arith.constant 0 : i32
    %c0_i32_0 = arith.constant 0 : i32
    %c0_i32_1 = arith.constant 0 : i32
    return %c0_i32, %c0_i32_0 : i32, i32
  }
  func.func @transform_6(%arg0: i32) -> (i32, i32) {
    %c0_i32 = arith.constant 0 : i32
    %c0_i32_0 = arith.constant 0 : i32
    %c0_i32_1 = arith.constant 0 : i32
    return %c0_i32, %c0_i32_0 : i32, i32
  }
  func.func @transform_7(%arg0: i32) -> (i32, i32) {
    %c0_i32 = arith.constant 0 : i32
    %c0_i32_0 = arith.constant 0 : i32
    return %arg0, %c0_i32 : i32, i32
  }
  func.func @transform_8(%arg0: i32) -> (i32, i32) {
    %c0_i32 = arith.constant 0 : i32
    %c0_i32_0 = arith.constant 0 : i32
    return %arg0, %c0_i32 : i32, i32
  }
}

</mosaic_0001>

<llo_original>
// kernel: tpu_custom_call.1
$region0: #{tpu_custom_call.1}
  #allocation0 [shape = 'u32[]', space=smem, size = 0x4, offset = 0x4, fixed_abs, tag = 'smem constant byte address 0x4 - core index']
  #allocation1 [shape = 'u32[144,128]{1,0:T(1,128)}', space=vmem, size = 0x12000, scoped, tag = 'internal scratch']
  %s0 = inlined_call_operand.vmem [shape: f32[64,16], index: 0, kind: input, shape index: {}]
  %s1 = inlined_call_operand.vmem [shape: bf16[16,128], index: 1, kind: input, shape index: {}]
  %s2 = inlined_call_operand.vmem [shape: f32[1,128], index: 2, kind: input, shape index: {}]
  %s3 = inlined_call_operand.vmem [shape: bf16[128,128], index: 3, kind: input, shape index: {}]
  %s4 = inlined_call_operand.vmem [shape: f32[1,128], index: 4, kind: input, shape index: {}]
  %s5 = inlined_call_operand.hbm [shape: bf16[128,256], index: 5, kind: input, shape index: {}]
  %s6 = inlined_call_operand.vmem [shape: f32[1,256], index: 6, kind: input, shape index: {}]
  %s7 = inlined_call_operand.vmem [shape: f32[64,16], index: 7, kind: output, shape index: {0}]
  %s8 = inlined_call_operand.vmem [shape: f32[64,1], index: 8, kind: output, shape index: {1}]
  %9 = xla_tuple %s7, %s8
  %s10 = sld [smem:[#allocation0]]
  $region73: #{tpu_custom_call.1} parent=0
    _
  %s12 = ssub.s32 1, %s10
  %s13 = scalar_select 0, %s12, %s10
  $region1: #{tpu_custom_call.1} parent=0
    #allocation2 [shape = 'u8[65536]{0}', space=vmem, size = 0x10000, scoped, tag = 'input window, operand 5, single buffered']
    #allocation3 [shape = 's32[2]{0}', space=sflag, size = 0x8, scoped, tag = 'scoped memory for tpu_custom_call.1']
    %14 = vsyncpa [#allocation3], 0
    loop: start=0, step=1, limit=4
    $region2: #{tpu_custom_call.1} parent=1 // loop_pre_header
      _
    $region3: #{tpu_custom_call.1} parent=1 // loop_header
      %s16 = sphi 0, %s20
      %p17 = scmp.ge.s32.totalorder %s16, 4
      %s26 = sphi 0, %s28
      %s29 = sphi 0, %s26
      %s30 = sphi 0, %s29
      %s46 = sphi 0, %s30
      %s50 = sphi 0, %s50
      %s52 = sphi 0, %s50
      %s53 = sphi 0, %s52
      %s67 = sphi 0, %s53
      %s71 = sphi 0, %s71
      %s73 = sphi 0, %s71
      %s74 = sphi 0, %s73
      %s88 = sphi 0, %s74
      %s92 = sphi 0, %s92
      %s94 = sphi 0, %s92
      %s95 = sphi 0, %s94
      %s109 = sphi 0, %s95
      %s113 = sphi 0, %s113
      %s115 = sphi 0, %s113
      %s116 = sphi 0, %s115
      %s130 = sphi 0, %s116
      %s134 = sphi 0, %s134
      %s136 = sphi 0, %s134
      %s137 = sphi 0, %s136
      %s151 = sphi 0, %s137
      %s155 = sphi 0, %s155
      %s157 = sphi 0, %s155
      %s158 = sphi 0, %s157
      %s172 = sphi 0, %s158
      %s178 = sphi 0, %s180
      %s181 = sphi 0, %s178
      %s182 = sphi 0, %s181
      %s198 = sphi 0, %s182
      %s204 = sphi 0, %s206
      %s207 = sphi 0, %s204
      %s208 = sphi 0, %s207
      %s224 = sphi 0, %s208
    $region4: #{tpu_custom_call.1} parent=1 // loop_header_branch
      %19 = sbr.rel (%p17) target = $region8
    $region5: #{tpu_custom_call.1} parent=1 // loop_body
      %s21 = ssub.s32 %s16, 1
      %s22 = ssub.s32 %s16, 2
      %s23 = sadd.s32 %s16, 1
      %s24 = ssub.s32 %s16, %s23
      %p25 = scmp.eq.s32.totalorder %s24, 0
      %s27 = sadd.s32 %s26, 1
      %s28 = scalar_select %p25, %s26, %s27
      %p31 = pneg %p25
      %p32 = scmp.eq.s32.totalorder %s16, 1
      %p33 = por %p31, %p32
      %p34 = scmp.ne.s32.totalorder %s26, %s29
      %p35 = scmp.eq.s32.totalorder %s16, 0
      %p36 = por %p34, %p35
      %p37 = scmp.ne.s32.totalorder %s26, %s29
      %p38 = scmp.eq.s32.totalorder %s21, 1
      %p39 = por %p37, %p38
      %p40 = scmp.ne.s32.totalorder %s29, %s30
      %p41 = scmp.eq.s32.totalorder %s21, 0
      %p42 = por %p40, %p41
      %p43 = scmp.ne.s32.totalorder %s29, %s30
      %p44 = scmp.eq.s32.totalorder %s22, 1
      %p45 = por %p43, %p44
      %p47 = scmp.ne.s32.totalorder %s30, %s46
      %p48 = scmp.eq.s32.totalorder %s22, 0
      %p49 = por %p47, %p48
      %s51 = sadd.s32 %s50, 1
      %p54 = scmp.eq.s32.totalorder %s16, 1
      %p55 = scmp.ne.s32.totalorder %s50, %s52
      %p56 = scmp.eq.s32.totalorder %s16, 0
      %p57 = por %p55, %p56
      %p58 = scmp.ne.s32.totalorder %s50, %s52
      %p59 = scmp.eq.s32.totalorder %s21, 1
      %p60 = por %p58, %p59
      %p61 = scmp.ne.s32.totalorder %s52, %s53
      %p62 = scmp.eq.s32.totalorder %s21, 0
      %p63 = por %p61, %p62
      %p64 = scmp.ne.s32.totalorder %s52, %s53
      %p65 = scmp.eq.s32.totalorder %s22, 1
      %p66 = por %p64, %p65
      %p68 = scmp.ne.s32.totalorder %s53, %s67
      %p69 = scmp.eq.s32.totalorder %s22, 0
      %p70 = por %p68, %p69
      %s72 = sadd.s32 %s71, 1
      %p75 = scmp.eq.s32.totalorder %s16, 1
      %p76 = scmp.ne.s32.totalorder %s71, %s73
      %p77 = scmp.eq.s32.totalorder %s16, 0
      %p78 = por %p76, %p77
      %p79 = scmp.ne.s32.totalorder %s71, %s73
      %p80 = scmp.eq.s32.totalorder %s21, 1
      %p81 = por %p79, %p80
      %p82 = scmp.ne.s32.totalorder %s73, %s74
      %p83 = scmp.eq.s32.totalorder %s21, 0
      %p84 = por %p82, %p83
      %p85 = scmp.ne.s32.totalorder %s73, %s74
      %p86 = scmp.eq.s32.totalorder %s22, 1
      %p87 = por %p85, %p86
      %p89 = scmp.ne.s32.totalorder %s74, %s88
      %p90 = scmp.eq.s32.totalorder %s22, 0
      %p91 = por %p89, %p90
      %s93 = sadd.s32 %s92, 1
      %p96 = scmp.eq.s32.totalorder %s16, 1
      %p97 = scmp.ne.s32.totalorder %s92, %s94
      %p98 = scmp.eq.s32.totalorder %s16, 0
      %p99 = por %p97, %p98
      %p100 = scmp.ne.s32.totalorder %s92, %s94
      %p101 = scmp.eq.s32.totalorder %s21, 1
      %p102 = por %p100, %p101
      %p103 = scmp.ne.s32.totalorder %s94, %s95
      %p104 = scmp.eq.s32.totalorder %s21, 0
      %p105 = por %p103, %p104
      %p106 = scmp.ne.s32.totalorder %s94, %s95
      %p107 = scmp.eq.s32.totalorder %s22, 1
      %p108 = por %p106, %p107
      %p110 = scmp.ne.s32.totalorder %s95, %s109
      %p111 = scmp.eq.s32.totalorder %s22, 0
      %p112 = por %p110, %p111
      %s114 = sadd.s32 %s113, 1
      %p117 = scmp.eq.s32.totalorder %s16, 1
      %p118 = scmp.ne.s32.totalorder %s113, %s115
      %p119 = scmp.eq.s32.totalorder %s16, 0
      %p120 = por %p118, %p119
      %p121 = scmp.ne.s32.totalorder %s113, %s115
      %p122 = scmp.eq.s32.totalorder %s21, 1
      %p123 = por %p121, %p122
      %p124 = scmp.ne.s32.totalorder %s115, %s116
      %p125 = scmp.eq.s32.totalorder %s21, 0
      %p126 = por %p124, %p125
      %p127 = scmp.ne.s32.totalorder %s115, %s116
      %p128 = scmp.eq.s32.totalorder %s22, 1
      %p129 = por %p127, %p128
      %p131 = scmp.ne.s32.totalorder %s116, %s130
      %p132 = scmp.eq.s32.totalorder %s22, 0
      %p133 = por %p131, %p132
      %s135 = sadd.s32 %s134, 1
      %p138 = scmp.eq.s32.totalorder %s16, 1
      %p139 = scmp.ne.s32.totalorder %s134, %s136
      %p140 = scmp.eq.s32.totalorder %s16, 0
      %p141 = por %p139, %p140
      %p142 = scmp.ne.s32.totalorder %s134, %s136
      %p143 = scmp.eq.s32.totalorder %s21, 1
      %p144 = por %p142, %p143
      %p145 = scmp.ne.s32.totalorder %s136, %s137
      %p146 = scmp.eq.s32.totalorder %s21, 0
      %p147 = por %p145, %p146
      %p148 = scmp.ne.s32.totalorder %s136, %s137
      %p149 = scmp.eq.s32.totalorder %s22, 1
      %p150 = por %p148, %p149
      %p152 = scmp.ne.s32.totalorder %s137, %s151
      %p153 = scmp.eq.s32.totalorder %s22, 0
      %p154 = por %p152, %p153
      %s156 = sadd.s32 %s155, 1
      %p159 = scmp.eq.s32.totalorder %s16, 1
      %p160 = scmp.ne.s32.totalorder %s155, %s157
      %p161 = scmp.eq.s32.totalorder %s16, 0
      %p162 = por %p160, %p161
      %p163 = scmp.ne.s32.totalorder %s155, %s157
      %p164 = scmp.eq.s32.totalorder %s21, 1
      %p165 = por %p163, %p164
      %p166 = scmp.ne.s32.totalorder %s157, %s158
      %p167 = scmp.eq.s32.totalorder %s21, 0
      %p168 = por %p166, %p167
      %p169 = scmp.ne.s32.totalorder %s157, %s158
      %p170 = scmp.eq.s32.totalorder %s22, 1
      %p171 = por %p169, %p170
      %p173 = scmp.ne.s32.totalorder %s158, %s172
      %p174 = scmp.eq.s32.totalorder %s22, 0
      %p175 = por %p173, %p174
      %s176 = ssub.s32 %s16, %s23
      %p177 = scmp.eq.s32.totalorder %s176, 0
      %s179 = sadd.s32 %s178, 1
      %s180 = scalar_select %p177, %s178, %s179
      %p183 = pneg %p177
      %p184 = scmp.eq.s32.totalorder %s16, 1
      %p185 = por %p183, %p184
      %p186 = scmp.ne.s32.totalorder %s178, %s181
      %p187 = scmp.eq.s32.totalorder %s16, 0
      %p188 = por %p186, %p187
      %p189 = scmp.ne.s32.totalorder %s178, %s181
      %p190 = scmp.eq.s32.totalorder %s21, 1
      %p191 = por %p189, %p190
      %p192 = scmp.ne.s32.totalorder %s181, %s182
      %p193 = scmp.eq.s32.totalorder %s21, 0
      %p194 = por %p192, %p193
      %p195 = scmp.ne.s32.totalorder %s181, %s182
      %p196 = scmp.eq.s32.totalorder %s22, 1
      %p197 = por %p195, %p196
      %p199 = scmp.ne.s32.totalorder %s182, %s198
      %p200 = scmp.eq.s32.totalorder %s22, 0
      %p201 = por %p199, %p200
      %s202 = ssub.s32 %s16, %s23
      %p203 = scmp.eq.s32.totalorder %s202, 0
      %s205 = sadd.s32 %s204, 1
      %s206 = scalar_select %p203, %s204, %s205
      %p209 = pneg %p203
      %p210 = scmp.eq.s32.totalorder %s16, 1
      %p211 = por %p209, %p210
      %p212 = scmp.ne.s32.totalorder %s204, %s207
      %p213 = scmp.eq.s32.totalorder %s16, 0
      %p214 = por %p212, %p213
      %p215 = scmp.ne.s32.totalorder %s204, %s207
      %p216 = scmp.eq.s32.totalorder %s21, 1
      %p217 = por %p215, %p216
      %p218 = scmp.ne.s32.totalorder %s207, %s208
      %p219 = scmp.eq.s32.totalorder %s21, 0
      %p220 = por %p218, %p219
      %p221 = scmp.ne.s32.totalorder %s207, %s208
      %p222 = scmp.eq.s32.totalorder %s22, 1
      %p223 = por %p221, %p222
      %p225 = scmp.ne.s32.totalorder %s208, %s224
      %p226 = scmp.eq.s32.totalorder %s22, 0
      %p227 = por %p225, %p226
      %p228 = scmp.le.s32.totalorder 1, %s16
      %p229 = scmp.lt.s32.totalorder %s16, 3
      %p230 = pnand %p228, %p229
      %p231 = pneg %p230
      // Predicated region
      $region9: #{tpu_custom_call.1} parent=5 // pred_check
        _
      $region10: #{tpu_custom_call.1} parent=5 // pred_check_branch
        %233 = sbr.rel (%p230) target = $region12
      $region11: #{tpu_custom_call.1} parent=5 // pred_region
        %s234 = ssub.s32 %s16, 1
        // Predicated region
        $region13: #{tpu_custom_call.1} parent=11 // pred_check
          %p235 = pneg %p63
        $region14: #{tpu_custom_call.1} parent=11 // pred_check_branch
          %237 = sbr.rel (%p235) target = $region16
        $region15: #{tpu_custom_call.1} parent=11 // pred_region
          _
        $region16: #{tpu_custom_call.1} parent=11 // pred_fallthru
          _
        // Predicated region
        $region17: #{tpu_custom_call.1} parent=11 // pred_check
          %p238 = pneg %p84
        $region18: #{tpu_custom_call.1} parent=11 // pred_check_branch
          %240 = sbr.rel (%p238) target = $region20
        $region19: #{tpu_custom_call.1} parent=11 // pred_region
          _
        $region20: #{tpu_custom_call.1} parent=11 // pred_fallthru
          _
        // Predicated region
        $region21: #{tpu_custom_call.1} parent=11 // pred_check
          %p241 = pneg %p105
        $region22: #{tpu_custom_call.1} parent=11 // pred_check_branch
          %243 = sbr.rel (%p241) target = $region24
        $region23: #{tpu_custom_call.1} parent=11 // pred_region
          _
        $region24: #{tpu_custom_call.1} parent=11 // pred_fallthru
          _
        // Predicated region
        $region25: #{tpu_custom_call.1} parent=11 // pred_check
          %p244 = pneg %p126
        $region26: #{tpu_custom_call.1} parent=11 // pred_check_branch
          %246 = sbr.rel (%p244) target = $region28
        $region27: #{tpu_custom_call.1} parent=11 // pred_region
          _
        $region28: #{tpu_custom_call.1} parent=11 // pred_fallthru
          _
        // Predicated region
        $region29: #{tpu_custom_call.1} parent=11 // pred_check
          %p247 = pneg %p147
        $region30: #{tpu_custom_call.1} parent=11 // pred_check_branch
          %249 = sbr.rel (%p247) target = $region32
        $region31: #{tpu_custom_call.1} parent=11 // pred_region
          %s251 = ssub.s32 2048, 2048
          %252 = vsyncadd [#allocation3], %s251
          %s253 = sshll.u32 [#allocation2], 4
          %s254 = int_to_ptr.vmem [resolvable:$true] %s253
          %259 = dma.hbm_to_vmem [thread:$0]  %s5, 2048, %s254, [#allocation3], 128, 128, 8
        $region32: #{tpu_custom_call.1} parent=11 // pred_fallthru
          _
        // Predicated region
        $region33: #{tpu_custom_call.1} parent=11 // pred_check
          %p260 = pneg %p168
        $region34: #{tpu_custom_call.1} parent=11 // pred_check_branch
          %262 = sbr.rel (%p260) target = $region36
        $region35: #{tpu_custom_call.1} parent=11 // pred_region
          _
        $region36: #{tpu_custom_call.1} parent=11 // pred_fallthru
          _
      $region12: #{tpu_custom_call.1} parent=5 // pred_fallthru
        _
      %p263 = scmp.lt.s32.totalorder %s16, 2
      // Predicated region
      $region37: #{tpu_custom_call.1} parent=5 // pred_check
        %p264 = pneg %p263
      $region38: #{tpu_custom_call.1} parent=5 // pred_check_branch
        %266 = sbr.rel (%p264) target = $region40
      $region39: #{tpu_custom_call.1} parent=5 // pred_region
        // Predicated region
        $region41: #{tpu_custom_call.1} parent=39 // pred_check
          %p267 = pneg %p36
        $region42: #{tpu_custom_call.1} parent=39 // pred_check_branch
          %269 = sbr.rel (%p267) target = $region44
        $region43: #{tpu_custom_call.1} parent=39 // pred_region
          %s270 = smul.u32 4, %s16
          %p271 = scmp.lt.s32.totalorder %s270, 7
          %s272 = scalar_select %p271, %s270, 7
          %s273 = smul.addr %s272, 8
          %s274 = scalar_lea.vmem %s0, %s273
          %s275 = smul.u32 4, %s16
        $region44: #{tpu_custom_call.1} parent=39 // pred_fallthru
          _
      $region40: #{tpu_custom_call.1} parent=5 // pred_fallthru
        _
      %p276 = scmp.le.s32.totalorder 1, %s16
      %p277 = scmp.lt.s32.totalorder %s16, 3
      %p278 = pnand %p276, %p277
      %p279 = pneg %p278
      // Predicated region
      $region45: #{tpu_custom_call.1} parent=5 // pred_check
        _
      $region46: #{tpu_custom_call.1} parent=5 // pred_check_branch
        %281 = sbr.rel (%p278) target = $region48
      $region47: #{tpu_custom_call.1} parent=5 // pred_region
        %s282 = ssub.s32 %s16, 1
        // Predicated region
        $region49: #{tpu_custom_call.1} parent=47 // pred_check
          %p283 = pneg %p147
        $region50: #{tpu_custom_call.1} parent=47 // pred_check_branch
          %285 = sbr.rel (%p283) target = $region52
        $region51: #{tpu_custom_call.1} parent=47 // pred_region
          %286 = dma.done [#allocation3], 2048
        $region52: #{tpu_custom_call.1} parent=47 // pred_fallthru
          _
        %s287 = smul.u32 4, %s21
        %p288 = scmp.lt.s32.totalorder %s287, 7
        %s289 = scalar_select %p288, %s287, 7
        %s290 = smul.addr %s289, 8
        %s291 = scalar_lea.vmem %s0, %s290
        %p292 = pneg %p42
        %p293 = pneg %p39
        %p294 = pneg %p63
        %p295 = pneg %p60
        %p296 = pneg %p84
        %p297 = pneg %p81
        %p298 = pneg %p105
        %p299 = pneg %p102
        %p300 = pneg %p126
        %p301 = pneg %p123
        %p302 = pneg %p147
        %p303 = pneg %p144
        %p304 = pneg %p168
        %p305 = pneg %p165
        %p306 = pneg %p194
        %p307 = pneg %p191
        %s308 = smul.u32 4, %s21
        %p309 = scmp.lt.s32.totalorder %s308, 7
        %s310 = scalar_select %p309, %s308, 7
        %s311 = smul.addr %s310, 8
        %s312 = scalar_lea.vmem %s7, %s311
        %p313 = pneg %p220
        %p314 = pneg %p217
        %s315 = smul.u32 4, %s21
        %p316 = scmp.lt.s32.totalorder %s315, 7
        %s317 = scalar_select %p316, %s315, 7
        %s318 = smul.addr %s317, 8
        %s319 = scalar_lea.vmem %s8, %s318
        %s320 = smul.u32 4, %s21
        %p321 = scmp.lt.s32.totalorder %s320, 7
        %s322 = scalar_select %p321, %s320, 7
        %s323 = smul.addr %s322, 8
        %s324 = scalar_lea.vmem %s0, %s323
        %s325 = smul.u32 4, %s21
        %s326 = smul.u32 4, %s21
        %p327 = scmp.lt.s32.totalorder %s326, 7
        %s328 = scalar_select %p327, %s326, 7
        %s329 = smul.addr %s328, 8
        %s330 = scalar_lea.vmem %s7, %s329
        %s331 = smul.u32 4, %s21
        %s332 = smul.u32 4, %s21
        %p333 = scmp.lt.s32.totalorder %s332, 7
        %s334 = scalar_select %p333, %s332, 7
        %s335 = smul.addr %s334, 8
        %s336 = scalar_lea.vmem %s8, %s335
        %s337 = smul.u32 4, %s21
        %v339 = vld [vmem:[%s324] sm:$0xff]
        %v340 = vld [vmem:[%s324 + $0x8] sm:$0xff]
        %v341 = vld [vmem:[%s324 + $0x10] sm:$0xff]
        %v342 = vld [vmem:[%s324 + $0x18] sm:$0xff]
        %v343 = vpack.c.bf16 %v340, %v339
        %v344 = vpack.c.bf16 %v342, %v341
        %v345 = vld [vmem:[%s1] sm:$0xf]
        %v346 = vld [vmem:[%s1 + $0x4] sm:$0xf]
        %v347 = vld [vmem:[%s2] sm:$0x1]
        %v349 = vlaneseq
        %v350 = vshrl.u32 %v349, 7
        %v351 = vsub.s32 0, %v350
        %v352 = vrot.slane %v347, %v351
        %v356 = vunpack.c.l.b16 %v345
        %v357 = vunpack.c.l.b16 %v346
        %v358 = vpack.c.b16 %v357, %v356
        %vm360 = vcmask 130048
        %v362 = vsel %vm360, %v343, 0
        %v365 = vsel %vm360, %v344, 0
        %367 = vmatprep.subr.bf16.mxu0 0
        %368 = vmatpush1.bf16.msra.mxu0 0
        %369 = vmatprep.subr.bf16.mxu0 0
        %370 = vmatpush1.bf16.msra.mxu0 0
        %371 = vmatprep.subr.bf16.mxu0 0
        %372 = vmatpush1.bf16.msra.mxu0 0
        %373 = vmatprep.subr.bf16.mxu0 0
        %374 = vmatpush1.bf16.msra.mxu0 0
        %375 = vmatprep.subr.bf16.mxu0 0
        %376 = vmatpush1.bf16.msra.mxu0 0
        %377 = vmatprep.subr.bf16.mxu0 0
        %378 = vmatpush1.bf16.msra.mxu0 0
        %379 = vmatprep.subr.bf16.mxu0 0
        %380 = vmatpush1.bf16.msra.mxu0 0
        %381 = vmatprep.subr.bf16.mxu0 0
        %382 = vmatpush1.bf16.msra.mxu0 %v358
        %383 = vmatprep.subr.bf16.mxu0 0
        %384 = vmatpush2.bf16.msra.mxu0 0
        %385 = vmatprep.subr.bf16.mxu0 0
        %386 = vmatpush2.bf16.msra.mxu0 0
        %387 = vmatprep.subr.bf16.mxu0 0
        %388 = vmatpush2.bf16.msra.mxu0 0
        %389 = vmatprep.subr.bf16.mxu0 0
        %390 = vmatpush2.bf16.msra.mxu0 0
        %391 = vmatprep.subr.bf16.mxu0 0
        %392 = vmatpush2.bf16.msra.mxu0 0
        %393 = vmatprep.subr.bf16.mxu0 0
        %394 = vmatpush2.bf16.msra.mxu0 0
        %395 = vmatprep.subr.bf16.mxu0 0
        %396 = vmatpush2.bf16.msra.mxu0 0
        %397 = vmatprep.subr.bf16.mxu0 0
        %398 = vmatpush2.bf16.msra.mxu0 0
        %399 = vmatprep.mubr.bf16.mxu0 0
        %400 = vmatmul.mubr.bf16.gmra.mxu0 %v362
        %v401 = vpop.f32.mrf.mxu0
        %v402 = vadd.f32 %v352, %v401
        %v403 = vpop.f32.mrf.mxu0
        %v404 = vpop.f32.mrf.mxu0
        %v405 = vadd.f32 %v352, %v404
        %v406 = vpop.f32.mrf.mxu0
        %407 = vmatprep.mubr.bf16.mxu0 0
        %408 = vmatmul.mubr.bf16.gmra.mxu0 %v365
        %v409 = vpop.f32.mrf.mxu0
        %v410 = vadd.f32 %v352, %v409
        %v411 = vpop.f32.mrf.mxu0
        %v412 = vpop.f32.mrf.mxu0
        %v413 = vadd.f32 %v352, %v412
        %v414 = vpop.f32.mrf.mxu0
        %415 = vdwg.mxu0
        %v416 = vmax.f32 %v402, 0.0
        %v417 = vmax.f32 %v405, 0.0
        %v418 = vmax.f32 %v410, 0.0
        %v419 = vmax.f32 %v413, 0.0
        %v420 = vpack.c.bf16 %v417, %v416
        %v421 = vpack.c.bf16 %v419, %v418
        %v422 = vld [vmem:[%s3] sm:$0xf]
        %v423 = vld [vmem:[%s3 + $0x4] sm:$0xf]
        %v424 = vld [vmem:[%s3 + $0x8] sm:$0xf]
        %v425 = vld [vmem:[%s3 + $0xc] sm:$0xf]
        %v426 = vld [vmem:[%s3 + $0x10] sm:$0xf]
        %v427 = vld [vmem:[%s3 + $0x14] sm:$0xf]
        %v428 = vld [vmem:[%s3 + $0x18] sm:$0xf]
        %v429 = vld [vmem:[%s3 + $0x1c] sm:$0xf]
        %v430 = vld [vmem:[%s3 + $0x20] sm:$0xf]
        %v431 = vld [vmem:[%s3 + $0x24] sm:$0xf]
        %v432 = vld [vmem:[%s3 + $0x28] sm:$0xf]
        %v433 = vld [vmem:[%s3 + $0x2c] sm:$0xf]
        %v434 = vld [vmem:[%s3 + $0x30] sm:$0xf]
        %v435 = vld [vmem:[%s3 + $0x34] sm:$0xf]
        %v436 = vld [vmem:[%s3 + $0x38] sm:$0xf]
        %v437 = vld [vmem:[%s3 + $0x3c] sm:$0xf]
        %v438 = vld [vmem:[%s4] sm:$0x1]
        %v440 = vlaneseq
        %v441 = vshrl.u32 %v440, 7
        %v442 = vsub.s32 0, %v441
        %v443 = vrot.slane %v438, %v442
        %v461 = vunpack.c.l.b16 %v422
        %v462 = vunpack.c.l.b16 %v423
        %v463 = vunpack.c.l.b16 %v424
        %v464 = vunpack.c.l.b16 %v425
        %v465 = vunpack.c.l.b16 %v426
        %v466 = vunpack.c.l.b16 %v427
        %v467 = vunpack.c.l.b16 %v428
        %v468 = vunpack.c.l.b16 %v429
        %v469 = vunpack.c.l.b16 %v430
        %v470 = vunpack.c.l.b16 %v431
        %v471 = vunpack.c.l.b16 %v432
        %v472 = vunpack.c.l.b16 %v433
        %v473 = vunpack.c.l.b16 %v434
        %v474 = vunpack.c.l.b16 %v435
        %v475 = vunpack.c.l.b16 %v436
        %v476 = vunpack.c.l.b16 %v437
        %v477 = vpack.c.b16 %v462, %v461
        %v478 = vpack.c.b16 %v464, %v463
        %v479 = vpack.c.b16 %v466, %v465
        %v480 = vpack.c.b16 %v468, %v467
        %v481 = vpack.c.b16 %v470, %v469
        %v482 = vpack.c.b16 %v472, %v471
        %v483 = vpack.c.b16 %v474, %v473
        %v484 = vpack.c.b16 %v476, %v475
        %493 = vmatprep.subr.bf16.mxu0 0
        %494 = vmatpush1.bf16.msra.mxu0 %v484
        %495 = vmatprep.subr.bf16.mxu0 0
        %496 = vmatpush1.bf16.msra.mxu0 %v483
        %497 = vmatprep.subr.bf16.mxu0 0
        %498 = vmatpush1.bf16.msra.mxu0 %v482
        %499 = vmatprep.subr.bf16.mxu0 0
        %500 = vmatpush1.bf16.msra.mxu0 %v481
        %501 = vmatprep.subr.bf16.mxu0 0
        %502 = vmatpush1.bf16.msra.mxu0 %v480
        %503 = vmatprep.subr.bf16.mxu0 0
        %504 = vmatpush1.bf16.msra.mxu0 %v479
        %505 = vmatprep.subr.bf16.mxu0 0
        %506 = vmatpush1.bf16.msra.mxu0 %v478
        %507 = vmatprep.subr.bf16.mxu0 0
        %508 = vmatpush1.bf16.msra.mxu0 %v477
        %509 = vmatprep.subr.bf16.mxu0 0
        %510 = vmatpush2.bf16.msra.mxu0 0
        %511 = vmatprep.subr.bf16.mxu0 0
        %512 = vmatpush2.bf16.msra.mxu0 0
        %513 = vmatprep.subr.bf16.mxu0 0
        %514 = vmatpush2.bf16.msra.mxu0 0
        %515 = vmatprep.subr.bf16.mxu0 0
        %516 = vmatpush2.bf16.msra.mxu0 0
        %517 = vmatprep.subr.bf16.mxu0 0
        %518 = vmatpush2.bf16.msra.mxu0 0
        %519 = vmatprep.subr.bf16.mxu0 0
        %520 = vmatpush2.bf16.msra.mxu0 0
        %521 = vmatprep.subr.bf16.mxu0 0
        %522 = vmatpush2.bf16.msra.mxu0 0
        %523 = vmatprep.subr.bf16.mxu0 0
        %524 = vmatpush2.bf16.msra.mxu0 0
        %525 = vmatprep.mubr.bf16.mxu0 0
        %526 = vmatmul.mubr.bf16.gmra.mxu0 %v420
        %v527 = vpop.f32.mrf.mxu0
        %v528 = vadd.f32 %v443, %v527
        %v529 = vpop.f32.mrf.mxu0
        %v530 = vpop.f32.mrf.mxu0
        %v531 = vadd.f32 %v443, %v530
        %v532 = vpop.f32.mrf.mxu0
        %533 = vmatprep.mubr.bf16.mxu0 0
        %534 = vmatmul.mubr.bf16.gmra.mxu0 %v421
        %v535 = vpop.f32.mrf.mxu0
        %v536 = vadd.f32 %v443, %v535
        %v537 = vpop.f32.mrf.mxu0
        %v538 = vpop.f32.mrf.mxu0
        %v539 = vadd.f32 %v443, %v538
        %v540 = vpop.f32.mrf.mxu0
        %541 = vdwg.mxu0
        %v542 = vmax.f32 %v528, 0.0
        %v543 = vmax.f32 %v531, 0.0
        %v544 = vmax.f32 %v536, 0.0
        %v545 = vmax.f32 %v539, 0.0
        %v546 = vpack.c.bf16 %v543, %v542
        %v547 = vpack.c.bf16 %v545, %v544
        %v548 = vld [vmem:[#allocation2] sm:$0xff]
        %v549 = vld [vmem:[#allocation2 + $0x8] sm:$0xff]
        %v550 = vld [vmem:[#allocation2 + $0x10] sm:$0xff]
        %v551 = vld [vmem:[#allocation2 + $0x18] sm:$0xff]
        %v552 = vld [vmem:[#allocation2 + $0x20] sm:$0xff]
        %v553 = vld [vmem:[#allocation2 + $0x28] sm:$0xff]
        %v554 = vld [vmem:[#allocation2 + $0x30] sm:$0xff]
        %v555 = vld [vmem:[#allocation2 + $0x38] sm:$0xff]
        %v556 = vld [vmem:[#allocation2 + $0x40] sm:$0xff]
        %v557 = vld [vmem:[#allocation2 + $0x48] sm:$0xff]
        %v558 = vld [vmem:[#allocation2 + $0x50] sm:$0xff]
        %v559 = vld [vmem:[#allocation2 + $0x58] sm:$0xff]
        %v560 = vld [vmem:[#allocation2 + $0x60] sm:$0xff]
        %v561 = vld [vmem:[#allocation2 + $0x68] sm:$0xff]
        %v562 = vld [vmem:[#allocation2 + $0x70] sm:$0xff]
        %v563 = vld [vmem:[#allocation2 + $0x78] sm:$0xff]
        %v564 = vld [vmem:[%s6] sm:$0x3]
        %v566 = vlaneseq
        %v567 = vshrl.u32 %v566, 7
        %v568 = vsub.s32 0, %v567
        %v569 = vrot.slane %v564, %v568
        %v570 = vlaneseq
        %v571 = vshrl.u32 %v570, 7
        %v572 = vsub.s32 1, %v571
        %v573 = vrot.slane %v564, %v572
        %v592 = vunpack.c.l.b16 %v548
        %v593 = vunpack.c.h.b16 %v548
        %v594 = vunpack.c.l.b16 %v549
        %v595 = vunpack.c.h.b16 %v549
        %v596 = vunpack.c.l.b16 %v550
        %v597 = vunpack.c.h.b16 %v550
        %v598 = vunpack.c.l.b16 %v551
        %v599 = vunpack.c.h.b16 %v551
        %v600 = vunpack.c.l.b16 %v552
        %v601 = vunpack.c.h.b16 %v552
        %v602 = vunpack.c.l.b16 %v553
        %v603 = vunpack.c.h.b16 %v553
        %v604 = vunpack.c.l.b16 %v554
        %v605 = vunpack.c.h.b16 %v554
        %v606 = vunpack.c.l.b16 %v555
        %v607 = vunpack.c.h.b16 %v555
        %v608 = vunpack.c.l.b16 %v556
        %v609 = vunpack.c.h.b16 %v556
        %v610 = vunpack.c.l.b16 %v557
        %v611 = vunpack.c.h.b16 %v557
        %v612 = vunpack.c.l.b16 %v558
        %v613 = vunpack.c.h.b16 %v558
        %v614 = vunpack.c.l.b16 %v559
        %v615 = vunpack.c.h.b16 %v559
        %v616 = vunpack.c.l.b16 %v560
        %v617 = vunpack.c.h.b16 %v560
        %v618 = vunpack.c.l.b16 %v561
        %v619 = vunpack.c.h.b16 %v561
        %v620 = vunpack.c.l.b16 %v562
        %v621 = vunpack.c.h.b16 %v562
        %v622 = vunpack.c.l.b16 %v563
        %v623 = vunpack.c.h.b16 %v563
        %v624 = vpack.c.b16 %v594, %v592
        %v625 = vpack.c.b16 %v595, %v593
        %v626 = vpack.c.b16 %v598, %v596
        %v627 = vpack.c.b16 %v599, %v597
        %v628 = vpack.c.b16 %v602, %v600
        %v629 = vpack.c.b16 %v603, %v601
        %v630 = vpack.c.b16 %v606, %v604
        %v631 = vpack.c.b16 %v607, %v605
        %v632 = vpack.c.b16 %v610, %v608
        %v633 = vpack.c.b16 %v611, %v609
        %v634 = vpack.c.b16 %v614, %v612
        %v635 = vpack.c.b16 %v615, %v613
        %v636 = vpack.c.b16 %v618, %v616
        %v637 = vpack.c.b16 %v619, %v617
        %v638 = vpack.c.b16 %v622, %v620
        %v639 = vpack.c.b16 %v623, %v621
        %656 = vmatprep.subr.bf16.mxu0 %v639
        %657 = vmatpush1.bf16.msra.mxu0 %v638
        %658 = vmatprep.subr.bf16.mxu0 %v637
        %659 = vmatpush1.bf16.msra.mxu0 %v636
        %660 = vmatprep.subr.bf16.mxu0 %v635
        %661 = vmatpush1.bf16.msra.mxu0 %v634
        %662 = vmatprep.subr.bf16.mxu0 %v633
        %663 = vmatpush1.bf16.msra.mxu0 %v632
        %664 = vmatprep.subr.bf16.mxu0 %v631
        %665 = vmatpush1.bf16.msra.mxu0 %v630
        %666 = vmatprep.subr.bf16.mxu0 %v629
        %667 = vmatpush1.bf16.msra.mxu0 %v628
        %668 = vmatprep.subr.bf16.mxu0 %v627
        %669 = vmatpush1.bf16.msra.mxu0 %v626
        %670 = vmatprep.subr.bf16.mxu0 %v625
        %671 = vmatpush1.bf16.msra.mxu0 %v624
        %672 = vmatprep.subr.bf16.mxu0 0
        %673 = vmatpush2.bf16.msra.mxu0 0
        %674 = vmatprep.subr.bf16.mxu0 0
        %675 = vmatpush2.bf16.msra.mxu0 0
        %676 = vmatprep.subr.bf16.mxu0 0
        %677 = vmatpush2.bf16.msra.mxu0 0
        %678 = vmatprep.subr.bf16.mxu0 0
        %679 = vmatpush2.bf16.msra.mxu0 0
        %680 = vmatprep.subr.bf16.mxu0 0
        %681 = vmatpush2.bf16.msra.mxu0 0
        %682 = vmatprep.subr.bf16.mxu0 0
        %683 = vmatpush2.bf16.msra.mxu0 0
        %684 = vmatprep.subr.bf16.mxu0 0
        %685 = vmatpush2.bf16.msra.mxu0 0
        %686 = vmatprep.subr.bf16.mxu0 0
        %687 = vmatpush2.bf16.msra.mxu0 0
        %688 = vmatprep.mubr.bf16.mxu0 0
        %689 = vmatmul.mubr.bf16.gmra.mxu0 %v546
        %v690 = vpop.f32.mrf.mxu0
        %v691 = vadd.f32 %v569, %v690
        %v692 = vpop.f32.mrf.mxu0
        %v693 = vadd.f32 %v573, %v692
        %v694 = vpop.f32.mrf.mxu0
        %v695 = vadd.f32 %v569, %v694
        %v696 = vpop.f32.mrf.mxu0
        %v697 = vadd.f32 %v573, %v696
        %698 = vmatprep.mubr.bf16.mxu0 0
        %699 = vmatmul.mubr.bf16.gmra.mxu0 %v547
        %v700 = vpop.f32.mrf.mxu0
        %v701 = vadd.f32 %v569, %v700
        %v702 = vpop.f32.mrf.mxu0
        %v703 = vadd.f32 %v573, %v702
        %v704 = vpop.f32.mrf.mxu0
        %v705 = vadd.f32 %v569, %v704
        %v706 = vpop.f32.mrf.mxu0
        %v707 = vadd.f32 %v573, %v706
        %708 = vdwg.mxu0
        %v709 = vsub.f32 %v339, %v691
        %v710 = vsub.f32 %v340, %v695
        %v711 = vsub.f32 %v341, %v701
        %v712 = vsub.f32 %v342, %v705
        %v713 = vsub.f32 0.0, %v693
        %v714 = vsub.f32 0.0, %v697
        %v715 = vsub.f32 0.0, %v703
        %v716 = vsub.f32 0.0, %v707
        %v717 = vmul.f32 %v713, 1.442695
        %v718 = vpow.pop %v717
        %v719 = vmul.f32 %v714, 1.442695
        %v720 = vpow.pop %v719
        %v721 = vmul.f32 %v715, 1.442695
        %v722 = vpow.pop %v721
        %v723 = vmul.f32 %v716, 1.442695
        %v724 = vpow.pop %v723
        %v725 = vmul.f32 %v709, %v718
        %v726 = vmul.f32 %v710, %v720
        %v727 = vmul.f32 %v711, %v722
        %v728 = vmul.f32 %v712, %v724
        %729 = vst.msk [vmem:[%s330] sm:$0xff] %vm360, %v725
        %730 = vst.msk [vmem:[%s330 + $0x8] sm:$0xff] %vm360, %v726
        %731 = vst.msk [vmem:[%s330 + $0x10] sm:$0xff] %vm360, %v727
        %732 = vst.msk [vmem:[%s330 + $0x18] sm:$0xff] %vm360, %v728
        %733 = vadd.xlane.f32.xlu0 %v693
        %v734 = vpop.xlane.xlu0 %733
        %735 = vadd.xlane.f32.xlu0 %v697
        %v736 = vpop.xlane.xlu0 %735
        %737 = vadd.xlane.f32.xlu0 %v703
        %v738 = vpop.xlane.xlu0 %737
        %739 = vadd.xlane.f32.xlu0 %v707
        %v740 = vpop.xlane.xlu0 %739
        %v741 = vsub.f32 0.0, %v734
        %v742 = vsub.f32 0.0, %v736
        %v743 = vsub.f32 0.0, %v738
        %v744 = vsub.f32 0.0, %v740
        %vm745 = vcmask 7168
        %746 = vst.msk [vmem:[%s336] sm:$0xff] %vm745, %v741
        %747 = vst.msk [vmem:[%s336 + $0x8] sm:$0xff] %vm745, %v742
        %748 = vst.msk [vmem:[%s336 + $0x10] sm:$0xff] %vm745, %v743
        %749 = vst.msk [vmem:[%s336 + $0x18] sm:$0xff] %vm745, %v744
        %s750 = smul.u32 4, %s21
        %p751 = scmp.lt.s32.totalorder %s750, 7
        %s752 = scalar_select %p751, %s750, 7
        %s753 = smul.addr %s752, 8
        %s754 = scalar_lea.vmem %s7, %s753
        %s755 = smul.u32 4, %s21
        %p756 = scmp.lt.s32.totalorder %s755, 7
        %s757 = scalar_select %p756, %s755, 7
        %s758 = smul.addr %s757, 8
        %s759 = scalar_lea.vmem %s8, %s758
        // Predicated region
        $region53: #{tpu_custom_call.1} parent=47 // pred_check
          %p760 = pneg %p191
        $region54: #{tpu_custom_call.1} parent=47 // pred_check_branch
          %762 = sbr.rel (%p760) target = $region56
        $region55: #{tpu_custom_call.1} parent=47 // pred_region
          %s763 = smul.u32 4, %s21
        $region56: #{tpu_custom_call.1} parent=47 // pred_fallthru
          _
        // Predicated region
        $region57: #{tpu_custom_call.1} parent=47 // pred_check
          %p764 = pneg %p217
        $region58: #{tpu_custom_call.1} parent=47 // pred_check_branch
          %766 = sbr.rel (%p764) target = $region60
        $region59: #{tpu_custom_call.1} parent=47 // pred_region
          %s767 = smul.u32 4, %s21
        $region60: #{tpu_custom_call.1} parent=47 // pred_fallthru
          _
      $region48: #{tpu_custom_call.1} parent=5 // pred_fallthru
        _
      %p768 = scmp.le.s32.totalorder 2, %s16
      // Predicated region
      $region61: #{tpu_custom_call.1} parent=5 // pred_check
        %p769 = pneg %p768
      $region62: #{tpu_custom_call.1} parent=5 // pred_check_branch
        %771 = sbr.rel (%p769) target = $region64
      $region63: #{tpu_custom_call.1} parent=5 // pred_region
        %s772 = ssub.s32 %s16, 2
        // Predicated region
        $region65: #{tpu_custom_call.1} parent=63 // pred_check
          %p773 = pneg %p197
        $region66: #{tpu_custom_call.1} parent=63 // pred_check_branch
          %775 = sbr.rel (%p773) target = $region68
        $region67: #{tpu_custom_call.1} parent=63 // pred_region
          %s776 = smul.u32 4, %s22
          %p777 = scmp.lt.s32.totalorder %s776, 7
          %s778 = scalar_select %p777, %s776, 7
          %s779 = smul.addr %s778, 8
          %s780 = scalar_lea.vmem %s7, %s779
        $region68: #{tpu_custom_call.1} parent=63 // pred_fallthru
          _
        // Predicated region
        $region69: #{tpu_custom_call.1} parent=63 // pred_check
          %p781 = pneg %p223
        $region70: #{tpu_custom_call.1} parent=63 // pred_check_branch
          %783 = sbr.rel (%p781) target = $region72
        $region71: #{tpu_custom_call.1} parent=63 // pred_region
          %s784 = smul.u32 4, %s22
          %p785 = scmp.lt.s32.totalorder %s784, 7
          %s786 = scalar_select %p785, %s784, 7
          %s787 = smul.addr %s786, 8
          %s788 = scalar_lea.vmem %s8, %s787
        $region72: #{tpu_custom_call.1} parent=63 // pred_fallthru
          _
      $region64: #{tpu_custom_call.1} parent=5 // pred_fallthru
        _
    $region6: #{tpu_custom_call.1} parent=1 // loop_footer
      %s20 = sadd.s32 1, %s16
    $region7: #{tpu_custom_call.1} parent=1 // loop_footer_branch
      %15 = sbr.rel target = $region3
    $region8: #{tpu_custom_call.1} parent=1 // loop_exit
      _
    %789 = vsyncpa [#allocation3], 1
    %s790 = scalar_lea.sflag [#allocation3], 1
    %791 = vsyncpa %s790, 1

</llo_original>
